<compile_context>
chip_gen: v7x
topology: tpu7x:2x2x1
jax: 0.10.0
libtpu: 0.0.40
codegen_flags: <defaults>
</compile_context>

<pallas_src>
import functools
import math

import jax
import jax.numpy as jnp
from jax.experimental import pallas as pl
from jax.experimental.pallas import tpu as pltpu


def _pad128(d):
    return ((d + 127) // 128) * 128


def _make_mlp_kernel(num_layers, batch_norm, user_activation, eps=1e-5):
    """Builds the fused MLP kernel body.

    Ref order:
      batch_norm=True : x_ref, w0, w1, ..., out_ref           (biases cancel under BN)
      batch_norm=False: x_ref, w0, b0, w1, b1, ..., out_ref
    All feature dims are already padded to multiples of 128 by the wrapper.
    """

    def kernel(*refs):
        x_ref = refs[0]
        out_ref = refs[-1]
        param_refs = refs[1:-1]

        h = x_ref[...].astype(jnp.float32)
        p = 0
        for i in range(num_layers):
            w = param_refs[p][...]                     # bf16 (in_pad, out_pad)
            p += 1
            # Linear on the MXU: bf16 operands, f32 accumulation.
            h = jnp.dot(h.astype(jnp.bfloat16), w,
                        preferred_element_type=jnp.float32)
            if batch_norm:
                # BatchNorm1d (training mode, gamma=1, beta=0); the linear bias is
                # exactly cancelled by the mean subtraction so it is never added.
                mean = jnp.mean(h, axis=0, keepdims=True)
                var = jnp.maximum(
                    jnp.mean(h * h, axis=0, keepdims=True) - mean * mean, 0.0)
                h = (h - mean) * jax.lax.rsqrt(var + eps)
            else:
                b = param_refs[p][...].astype(jnp.float32)   # (1, out_pad)
                p += 1
                h = h + b
            # Intermediate layers always apply ReLU; last layer only if user_activation.
            apply_relu = True if i < num_layers - 1 else bool(user_activation)
            if apply_relu:
                h = jnp.maximum(h, 0.0)
            # dropout_rates == 0 -> identity (handled by config).
        out_ref[...] = h.astype(out_ref.dtype)

    return kernel


def mlp_forward(x, weights, biases, *, batch_norm, user_activation):
    """Fused MlpLayer forward pass as a single grid-less pallas_call.

    x:       (B, input_dim) float32
    weights: list of (in_i, out_i) float32
    biases:  list of (1, out_i) float32  (ignored when batch_norm=True: they cancel)
    """
    num_layers = len(weights)
    B, in_dim = x.shape
    out_dim = weights[-1].shape[1]

    # Zero-pad feature dims to multiples of 128 (lane-dense activations / weights).
    in_pad = _pad128(in_dim)
    x_p = jnp.pad(x, ((0, 0), (0, in_pad - in_dim)))

    params = []
    prev_pad = in_pad
    for w, b in zip(weights, biases):
        di, do = w.shape
        do_pad = _pad128(do)
        w_p = jnp.pad(w, ((0, prev_pad - di), (0, do_pad - do))).astype(jnp.bfloat16)
        params.append(w_p)
        if not batch_norm:
            params.append(jnp.pad(b, ((0, 0), (0, do_pad - do))))
        prev_pad = do_pad
    out_pad = prev_pad

    kernel = _make_mlp_kernel(num_layers, batch_norm, user_activation)

    vmem_spec = pl.BlockSpec(memory_space=pltpu.VMEM)
    out_p = pl.pallas_call(
        kernel,
        out_shape=jax.ShapeDtypeStruct((B, out_pad), jnp.float32),
        in_specs=[vmem_spec] * (1 + len(params)),
        out_specs=vmem_spec,
    )(x_p, *params)

    return out_p[:, :out_dim]


def init_mlp_params(key, input_dim, hidden_units):
    """Deterministic xavier_normal_ weights (stored transposed), zero biases."""
    layers = [input_dim] + list(hidden_units)
    weights, biases = [], []
    for i in range(len(layers) - 1):
        fan_in, fan_out = layers[i], layers[i + 1]
        key, sub = jax.random.split(key)
        std = math.sqrt(2.0 / (fan_in + fan_out))
        # torch weight is (out, in); store its transpose (in, out) for h @ W.
        w = std * jax.random.normal(sub, (fan_in, fan_out), dtype=jnp.float32)
        b = jnp.zeros((1, fan_out), dtype=jnp.float32)
        weights.append(w)
        biases.append(b)
    return weights, biases


def mlp_reference(x, weights, biases, *, batch_norm, user_activation, eps=1e-5):
    """Pure-JAX f32 reference of the same forward pass."""
    h = x
    n = len(weights)
    for i, (w, b) in enumerate(zip(weights, biases)):
        h = h @ w + b
        if batch_norm:
            mean = jnp.mean(h, axis=0, keepdims=True)
            var = jnp.mean((h - mean) ** 2, axis=0, keepdims=True)
            h = (h - mean) / jnp.sqrt(var + eps)
        apply_relu = True if i < n - 1 else bool(user_activation)
        if apply_relu:
            h = jnp.maximum(h, 0.0)
    return h


if __name__ == "__main__":
    # Module config (a valid MlpLayer instantiation).
    input_dim = 32
    hidden_units = [64, 48, 16]
    batch_norm = True
    user_activation = False      # last layer: no ReLU; intermediates: ReLU
    dropout_rates = 0.0          # deterministic forward
    batch = 8

    key = jax.random.PRNGKey(0)
    key, xkey = jax.random.split(key)
    x = jax.random.normal(xkey, (batch, input_dim), dtype=jnp.float32)

    weights, biases = init_mlp_params(key, input_dim, hidden_units)

    fwd = jax.jit(functools.partial(
        mlp_forward, batch_norm=batch_norm, user_activation=user_activation))
    out = jax.block_until_ready(fwd(x, weights, biases))

    ref = mlp_reference(x, weights, biases,
                        batch_norm=batch_norm, user_activation=user_activation)
    assert out.shape == (batch, hidden_units[-1])
    # bf16 MXU operands (f32 accumulation) vs a pure-f32 reference -> relaxed tolerance.
    assert jnp.allclose(out, ref, atol=3e-2, rtol=3e-2), \
        float(jnp.max(jnp.abs(out - ref)))

    print("KERNEL_OK")
</pallas_src>

<mosaic_0001>
module attributes {stable_mosaic.version = 11 : i64} {
  func.func @kernel(%arg0: memref<8x128xf32, #tpu.memory_space<vmem>>, %arg1: memref<128x128xbf16, #tpu.memory_space<vmem>>, %arg2: memref<128x128xbf16, #tpu.memory_space<vmem>>, %arg3: memref<128x128xbf16, #tpu.memory_space<vmem>>, %arg4: memref<8x128xf32, #tpu.memory_space<vmem>>) attributes {dimension_semantics = [], scalar_prefetch = 0 : i64, scratch_operands = 0 : i64, tpu.core_type = #tpu.core_type<tc>} {
    %c0 = arith.constant 0 : index
    %c0_0 = arith.constant 0 : index
    %0 = vector.load %arg0[%c0, %c0_0] : memref<8x128xf32, #tpu.memory_space<vmem>>, vector<8x128xf32>
    %c0_1 = arith.constant 0 : index
    %c0_2 = arith.constant 0 : index
    %1 = vector.load %arg1[%c0_1, %c0_2] : memref<128x128xbf16, #tpu.memory_space<vmem>>, vector<128x128xbf16>
    %2 = arith.truncf %0 : vector<8x128xf32> to vector<8x128xbf16>
    %cst = arith.constant dense<0.000000e+00> : vector<8x128xf32>
    %3 = tpu.matmul %2, %1, %cst {dimension_numbers = #tpu.dot_dimension_numbers<[1], [0], [0], [1], [0, 0, 1, 1], [], []>} : vector<8x128xbf16>, vector<128x128xbf16>, vector<8x128xf32> -> vector<8x128xf32>
    %cst_3 = arith.constant dense<0.000000e+00> : vector<128xf32>
    %4 = vector.multi_reduction <add>, %3, %cst_3 [0] : vector<8x128xf32> to vector<128xf32>
    %5 = vector.shape_cast %4 : vector<128xf32> to vector<1x128xf32>
    %cst_4 = arith.constant 8.000000e+00 : f32
    %6 = vector.broadcast %cst_4 : f32 to vector<1x128xf32>
    %7 = arith.divf %5, %6 : vector<1x128xf32>
    %8 = arith.mulf %3, %3 : vector<8x128xf32>
    %cst_5 = arith.constant dense<0.000000e+00> : vector<128xf32>
    %9 = vector.multi_reduction <add>, %8, %cst_5 [0] : vector<8x128xf32> to vector<128xf32>
    %10 = vector.shape_cast %9 : vector<128xf32> to vector<1x128xf32>
    %cst_6 = arith.constant 8.000000e+00 : f32
    %11 = vector.broadcast %cst_6 : f32 to vector<1x128xf32>
    %12 = arith.divf %10, %11 : vector<1x128xf32>
    %13 = arith.mulf %7, %7 : vector<1x128xf32>
    %14 = arith.subf %12, %13 : vector<1x128xf32>
    %cst_7 = arith.constant 0.000000e+00 : f32
    %15 = vector.broadcast %cst_7 : f32 to vector<1x128xf32>
    %16 = arith.maximumf %14, %15 : vector<1x128xf32>
    %17 = vector.broadcast %7 : vector<1x128xf32> to vector<8x128xf32>
    %18 = arith.subf %3, %17 : vector<8x128xf32>
    %cst_8 = arith.constant 9.99999974E-6 : f32
    %19 = vector.broadcast %cst_8 : f32 to vector<1x128xf32>
    %20 = arith.addf %16, %19 : vector<1x128xf32>
    %21 = math.rsqrt %20 : vector<1x128xf32>
    %22 = vector.broadcast %21 : vector<1x128xf32> to vector<8x128xf32>
    %23 = arith.mulf %18, %22 : vector<8x128xf32>
    %cst_9 = arith.constant 0.000000e+00 : f32
    %24 = vector.broadcast %cst_9 : f32 to vector<8x128xf32>
    %25 = arith.maximumf %23, %24 : vector<8x128xf32>
    %c0_10 = arith.constant 0 : index
    %c0_11 = arith.constant 0 : index
    %26 = vector.load %arg2[%c0_10, %c0_11] : memref<128x128xbf16, #tpu.memory_space<vmem>>, vector<128x128xbf16>
    %27 = arith.truncf %25 : vector<8x128xf32> to vector<8x128xbf16>
    %cst_12 = arith.constant dense<0.000000e+00> : vector<8x128xf32>
    %28 = tpu.matmul %27, %26, %cst_12 {dimension_numbers = #tpu.dot_dimension_numbers<[1], [0], [0], [1], [0, 0, 1, 1], [], []>} : vector<8x128xbf16>, vector<128x128xbf16>, vector<8x128xf32> -> vector<8x128xf32>
    %cst_13 = arith.constant dense<0.000000e+00> : vector<128xf32>
    %29 = vector.multi_reduction <add>, %28, %cst_13 [0] : vector<8x128xf32> to vector<128xf32>
    %30 = vector.shape_cast %29 : vector<128xf32> to vector<1x128xf32>
    %cst_14 = arith.constant 8.000000e+00 : f32
    %31 = vector.broadcast %cst_14 : f32 to vector<1x128xf32>
    %32 = arith.divf %30, %31 : vector<1x128xf32>
    %33 = arith.mulf %28, %28 : vector<8x128xf32>
    %cst_15 = arith.constant dense<0.000000e+00> : vector<128xf32>
    %34 = vector.multi_reduction <add>, %33, %cst_15 [0] : vector<8x128xf32> to vector<128xf32>
    %35 = vector.shape_cast %34 : vector<128xf32> to vector<1x128xf32>
    %cst_16 = arith.constant 8.000000e+00 : f32
    %36 = vector.broadcast %cst_16 : f32 to vector<1x128xf32>
    %37 = arith.divf %35, %36 : vector<1x128xf32>
    %38 = arith.mulf %32, %32 : vector<1x128xf32>
    %39 = arith.subf %37, %38 : vector<1x128xf32>
    %cst_17 = arith.constant 0.000000e+00 : f32
    %40 = vector.broadcast %cst_17 : f32 to vector<1x128xf32>
    %41 = arith.maximumf %39, %40 : vector<1x128xf32>
    %42 = vector.broadcast %32 : vector<1x128xf32> to vector<8x128xf32>
    %43 = arith.subf %28, %42 : vector<8x128xf32>
    %cst_18 = arith.constant 9.99999974E-6 : f32
    %44 = vector.broadcast %cst_18 : f32 to vector<1x128xf32>
    %45 = arith.addf %41, %44 : vector<1x128xf32>
    %46 = math.rsqrt %45 : vector<1x128xf32>
    %47 = vector.broadcast %46 : vector<1x128xf32> to vector<8x128xf32>
    %48 = arith.mulf %43, %47 : vector<8x128xf32>
    %cst_19 = arith.constant 0.000000e+00 : f32
    %49 = vector.broadcast %cst_19 : f32 to vector<8x128xf32>
    %50 = arith.maximumf %48, %49 : vector<8x128xf32>
    %c0_20 = arith.constant 0 : index
    %c0_21 = arith.constant 0 : index
    %51 = vector.load %arg3[%c0_20, %c0_21] : memref<128x128xbf16, #tpu.memory_space<vmem>>, vector<128x128xbf16>
    %52 = arith.truncf %50 : vector<8x128xf32> to vector<8x128xbf16>
    %cst_22 = arith.constant dense<0.000000e+00> : vector<8x128xf32>
    %53 = tpu.matmul %52, %51, %cst_22 {dimension_numbers = #tpu.dot_dimension_numbers<[1], [0], [0], [1], [0, 0, 1, 1], [], []>} : vector<8x128xbf16>, vector<128x128xbf16>, vector<8x128xf32> -> vector<8x128xf32>
    %cst_23 = arith.constant dense<0.000000e+00> : vector<128xf32>
    %54 = vector.multi_reduction <add>, %53, %cst_23 [0] : vector<8x128xf32> to vector<128xf32>
    %55 = vector.shape_cast %54 : vector<128xf32> to vector<1x128xf32>
    %cst_24 = arith.constant 8.000000e+00 : f32
    %56 = vector.broadcast %cst_24 : f32 to vector<1x128xf32>
    %57 = arith.divf %55, %56 : vector<1x128xf32>
    %58 = arith.mulf %53, %53 : vector<8x128xf32>
    %cst_25 = arith.constant dense<0.000000e+00> : vector<128xf32>
    %59 = vector.multi_reduction <add>, %58, %cst_25 [0] : vector<8x128xf32> to vector<128xf32>
    %60 = vector.shape_cast %59 : vector<128xf32> to vector<1x128xf32>
    %cst_26 = arith.constant 8.000000e+00 : f32
    %61 = vector.broadcast %cst_26 : f32 to vector<1x128xf32>
    %62 = arith.divf %60, %61 : vector<1x128xf32>
    %63 = arith.mulf %57, %57 : vector<1x128xf32>
    %64 = arith.subf %62, %63 : vector<1x128xf32>
    %cst_27 = arith.constant 0.000000e+00 : f32
    %65 = vector.broadcast %cst_27 : f32 to vector<1x128xf32>
    %66 = arith.maximumf %64, %65 : vector<1x128xf32>
    %67 = vector.broadcast %57 : vector<1x128xf32> to vector<8x128xf32>
    %68 = arith.subf %53, %67 : vector<8x128xf32>
    %cst_28 = arith.constant 9.99999974E-6 : f32
    %69 = vector.broadcast %cst_28 : f32 to vector<1x128xf32>
    %70 = arith.addf %66, %69 : vector<1x128xf32>
    %71 = math.rsqrt %70 : vector<1x128xf32>
    %72 = vector.broadcast %71 : vector<1x128xf32> to vector<8x128xf32>
    %73 = arith.mulf %68, %72 : vector<8x128xf32>
    %c0_29 = arith.constant 0 : index
    %c0_30 = arith.constant 0 : index
    %74 = vector.load %arg4[%c0_29, %c0_30] : memref<8x128xf32, #tpu.memory_space<vmem>>, vector<8x128xf32>
    tpu.vector_store %arg4[%c0_29, %c0_30], %73 {strides = array<i32>} : memref<8x128xf32, #tpu.memory_space<vmem>>, vector<8x128xf32>,
    return
  }
}

</mosaic_0001>

<llo_original>
// kernel: mlp_forward.1
$region0: #{mlp_forward.1}
  #allocation0 [shape = 'u32[]', space=smem, size = 0x4, offset = 0x4, fixed_abs, tag = 'smem constant byte address 0x4 - core index']
  #allocation1 [shape = 'u32[144,128]{1,0:T(1,128)}', space=vmem, size = 0x12000, scoped, tag = 'internal scratch']
  %s0 = inlined_call_operand.vmem [shape: f32[8,128], index: 0, kind: input, shape index: {}]
  %s1 = inlined_call_operand.vmem [shape: bf16[128,128], index: 1, kind: input, shape index: {}]
  %s2 = inlined_call_operand.vmem [shape: bf16[128,128], index: 2, kind: input, shape index: {}]
  %s3 = inlined_call_operand.vmem [shape: bf16[128,128], index: 3, kind: input, shape index: {}]
  %s4 = inlined_call_operand.hbm [shape: f32[8,128], index: 4, kind: output, shape index: {}]
  %s5 = sld [smem:[#allocation0]]
  $region26: #{mlp_forward.1} parent=0
    _
  %s7 = ssub.s32 1, %s5
  %s8 = scalar_select 0, %s7, %s5
  $region1: #{mlp_forward.1} parent=0
    #allocation2 [shape = 'u8[4096]{0}', space=vmem, size = 0x1000, scoped, tag = 'output window, operand 0, single buffered']
    #allocation3 [shape = 's32[1]{0}', space=sflag, size = 0x4, scoped, tag = 'scoped memory for mlp_forward.1']
    %9 = vsyncpa [#allocation3], 0
    // Predicated region
    $region2: #{mlp_forward.1} parent=1 // pred_check
      _
    $region3: #{mlp_forward.1} parent=1 // pred_check_branch
      %11 = sbr.rel (0) target = $region5
    $region4: #{mlp_forward.1} parent=1 // pred_region
      _
    $region5: #{mlp_forward.1} parent=1 // pred_fallthru
      _
    // Predicated region
    $region6: #{mlp_forward.1} parent=1 // pred_check
      _
    $region7: #{mlp_forward.1} parent=1 // pred_check_branch
      %13 = sbr.rel (0) target = $region9
    $region8: #{mlp_forward.1} parent=1 // pred_region
      _
    $region9: #{mlp_forward.1} parent=1 // pred_fallthru
      _
    // Predicated region
    $region10: #{mlp_forward.1} parent=1 // pred_check
      _
    $region11: #{mlp_forward.1} parent=1 // pred_check_branch
      %15 = sbr.rel (0) target = $region13
    $region12: #{mlp_forward.1} parent=1 // pred_region
      _
    $region13: #{mlp_forward.1} parent=1 // pred_fallthru
      _
    // Predicated region
    $region14: #{mlp_forward.1} parent=1 // pred_check
      _
    $region15: #{mlp_forward.1} parent=1 // pred_check_branch
      %17 = sbr.rel (0) target = $region17
    $region16: #{mlp_forward.1} parent=1 // pred_region
      _
    $region17: #{mlp_forward.1} parent=1 // pred_fallthru
      _
    %v19 = vld [vmem:[%s0] sm:$0xff]
    %v20 = vld [vmem:[%s1] sm:$0xf]
    %v21 = vld [vmem:[%s1 + $0x4] sm:$0xf]
    %v22 = vld [vmem:[%s1 + $0x8] sm:$0xf]
    %v23 = vld [vmem:[%s1 + $0xc] sm:$0xf]
    %v24 = vld [vmem:[%s1 + $0x10] sm:$0xf]
    %v25 = vld [vmem:[%s1 + $0x14] sm:$0xf]
    %v26 = vld [vmem:[%s1 + $0x18] sm:$0xf]
    %v27 = vld [vmem:[%s1 + $0x1c] sm:$0xf]
    %v28 = vld [vmem:[%s1 + $0x20] sm:$0xf]
    %v29 = vld [vmem:[%s1 + $0x24] sm:$0xf]
    %v30 = vld [vmem:[%s1 + $0x28] sm:$0xf]
    %v31 = vld [vmem:[%s1 + $0x2c] sm:$0xf]
    %v32 = vld [vmem:[%s1 + $0x30] sm:$0xf]
    %v33 = vld [vmem:[%s1 + $0x34] sm:$0xf]
    %v34 = vld [vmem:[%s1 + $0x38] sm:$0xf]
    %v35 = vld [vmem:[%s1 + $0x3c] sm:$0xf]
    %v36 = vpack.c.bf16 %v19, %v19
    %v53 = vunpack.c.l.b16 %v20
    %v54 = vunpack.c.l.b16 %v21
    %v55 = vunpack.c.l.b16 %v22
    %v56 = vunpack.c.l.b16 %v23
    %v57 = vunpack.c.l.b16 %v24
    %v58 = vunpack.c.l.b16 %v25
    %v59 = vunpack.c.l.b16 %v26
    %v60 = vunpack.c.l.b16 %v27
    %v61 = vunpack.c.l.b16 %v28
    %v62 = vunpack.c.l.b16 %v29
    %v63 = vunpack.c.l.b16 %v30
    %v64 = vunpack.c.l.b16 %v31
    %v65 = vunpack.c.l.b16 %v32
    %v66 = vunpack.c.l.b16 %v33
    %v67 = vunpack.c.l.b16 %v34
    %v68 = vunpack.c.l.b16 %v35
    %v69 = vpack.c.b16 %v54, %v53
    %v70 = vpack.c.b16 %v56, %v55
    %v71 = vpack.c.b16 %v58, %v57
    %v72 = vpack.c.b16 %v60, %v59
    %v73 = vpack.c.b16 %v62, %v61
    %v74 = vpack.c.b16 %v64, %v63
    %v75 = vpack.c.b16 %v66, %v65
    %v76 = vpack.c.b16 %v68, %v67
    %85 = vmatprep.subr.bf16.mxu0 0
    %86 = vmatpush1.bf16.msra.mxu0 %v69
    %87 = vmatprep.subr.bf16.mxu0 0
    %88 = vmatpush1.bf16.msra.mxu0 %v70
    %89 = vmatprep.subr.bf16.mxu0 0
    %90 = vmatpush1.bf16.msra.mxu0 %v71
    %91 = vmatprep.subr.bf16.mxu0 0
    %92 = vmatpush1.bf16.msra.mxu0 %v72
    %93 = vmatprep.subr.bf16.mxu0 0
    %94 = vmatpush1.bf16.msra.mxu0 %v73
    %95 = vmatprep.subr.bf16.mxu0 0
    %96 = vmatpush1.bf16.msra.mxu0 %v74
    %97 = vmatprep.subr.bf16.mxu0 0
    %98 = vmatpush1.bf16.msra.mxu0 %v75
    %99 = vmatprep.subr.bf16.mxu0 0
    %100 = vmatpush1.bf16.msra.mxu0 %v76
    %101 = vmatprep.subr.bf16.mxu0 0
    %102 = vmatpush1.bf16.msra.mxu0 0
    %103 = vmatprep.subr.bf16.mxu0 0
    %104 = vmatpush1.bf16.msra.mxu0 0
    %105 = vmatprep.subr.bf16.mxu0 0
    %106 = vmatpush1.bf16.msra.mxu0 0
    %107 = vmatprep.subr.bf16.mxu0 0
    %108 = vmatpush1.bf16.msra.mxu0 0
    %109 = vmatprep.subr.bf16.mxu0 0
    %110 = vmatpush1.bf16.msra.mxu0 0
    %111 = vmatprep.subr.bf16.mxu0 0
    %112 = vmatpush1.bf16.msra.mxu0 0
    %113 = vmatprep.subr.bf16.mxu0 0
    %114 = vmatpush1.bf16.msra.mxu0 0
    %115 = vmatprep.subr.bf16.mxu0 0
    %116 = vmatpush1.bf16.msra.mxu0 0
    %117 = vmatprep.mubr.bf16.mxu0 0
    %118 = vmatmul.mubr.bf16.gmra.mrb[0].mxu0 %v36
    %v119 = vpop.f32.mrb[0].mxu0
    %v120 = vadd.f32 0.0, %v119
    %v121 = vpop.f32.mrb[0].mxu0
    %v122 = vpop.f32.mrb[0].mxu0
    %v123 = vpop.f32.mrb[0].mxu0
    %124 = vdwg.mxu0
    %v125 = vrot.slane %v120, 4
    %v126 = vadd.f32 %v120, %v125
    %v127 = vrot.slane %v126, 2
    %v128 = vadd.f32 %v126, %v127
    %v129 = vrot.slane %v128, 1
    %v130 = vadd.f32 %v128, %v129
    %v131 = vrcp.pop 8.0
    %v132 = vmul.f32 %v130, %v131
    %v133 = vmul.f32 %v120, %v120
    %v134 = vrot.slane %v133, 4
    %v135 = vadd.f32 %v133, %v134
    %v136 = vrot.slane %v135, 2
    %v137 = vadd.f32 %v135, %v136
    %v138 = vrot.slane %v137, 1
    %v139 = vadd.f32 %v137, %v138
    %v140 = vmul.f32 %v139, %v131
    %v141 = vmul.f32 %v132, %v132
    %v142 = vsub.f32 %v140, %v141
    %v143 = vmax.f32 %v142, 0.0
    %v144 = vsub.f32 %v120, %v132
    %v145 = vadd.f32 %v143, 1e-05
    %v146 = vrsqrt.pop %v145
    %v147 = vmul.f32 %v144, %v146
    %v148 = vmax.f32 %v147, 0.0
    %v149 = vld [vmem:[%s2] sm:$0xf]
    %v150 = vld [vmem:[%s2 + $0x4] sm:$0xf]
    %v151 = vld [vmem:[%s2 + $0x8] sm:$0xf]
    %v152 = vld [vmem:[%s2 + $0xc] sm:$0xf]
    %v153 = vld [vmem:[%s2 + $0x10] sm:$0xf]
    %v154 = vld [vmem:[%s2 + $0x14] sm:$0xf]
    %v155 = vld [vmem:[%s2 + $0x18] sm:$0xf]
    %v156 = vld [vmem:[%s2 + $0x1c] sm:$0xf]
    %v157 = vld [vmem:[%s2 + $0x20] sm:$0xf]
    %v158 = vld [vmem:[%s2 + $0x24] sm:$0xf]
    %v159 = vld [vmem:[%s2 + $0x28] sm:$0xf]
    %v160 = vld [vmem:[%s2 + $0x2c] sm:$0xf]
    %v161 = vld [vmem:[%s2 + $0x30] sm:$0xf]
    %v162 = vld [vmem:[%s2 + $0x34] sm:$0xf]
    %v163 = vld [vmem:[%s2 + $0x38] sm:$0xf]
    %v164 = vld [vmem:[%s2 + $0x3c] sm:$0xf]
    %v165 = vpack.c.bf16 %v148, %v148
    %v182 = vunpack.c.l.b16 %v149
    %v183 = vunpack.c.l.b16 %v150
    %v184 = vunpack.c.l.b16 %v151
    %v185 = vunpack.c.l.b16 %v152
    %v186 = vunpack.c.l.b16 %v153
    %v187 = vunpack.c.l.b16 %v154
    %v188 = vunpack.c.l.b16 %v155
    %v189 = vunpack.c.l.b16 %v156
    %v190 = vunpack.c.l.b16 %v157
    %v191 = vunpack.c.l.b16 %v158
    %v192 = vunpack.c.l.b16 %v159
    %v193 = vunpack.c.l.b16 %v160
    %v194 = vunpack.c.l.b16 %v161
    %v195 = vunpack.c.l.b16 %v162
    %v196 = vunpack.c.l.b16 %v163
    %v197 = vunpack.c.l.b16 %v164
    %v198 = vpack.c.b16 %v183, %v182
    %v199 = vpack.c.b16 %v185, %v184
    %v200 = vpack.c.b16 %v187, %v186
    %v201 = vpack.c.b16 %v189, %v188
    %v202 = vpack.c.b16 %v191, %v190
    %v203 = vpack.c.b16 %v193, %v192
    %v204 = vpack.c.b16 %v195, %v194
    %v205 = vpack.c.b16 %v197, %v196
    %214 = vmatprep.subr.bf16.mxu0 0
    %215 = vmatpush1.bf16.msra.mxu0 %v198
    %216 = vmatprep.subr.bf16.mxu0 0
    %217 = vmatpush1.bf16.msra.mxu0 %v199
    %218 = vmatprep.subr.bf16.mxu0 0
    %219 = vmatpush1.bf16.msra.mxu0 %v200
    %220 = vmatprep.subr.bf16.mxu0 0
    %221 = vmatpush1.bf16.msra.mxu0 %v201
    %222 = vmatprep.subr.bf16.mxu0 0
    %223 = vmatpush1.bf16.msra.mxu0 %v202
    %224 = vmatprep.subr.bf16.mxu0 0
    %225 = vmatpush1.bf16.msra.mxu0 %v203
    %226 = vmatprep.subr.bf16.mxu0 0
    %227 = vmatpush1.bf16.msra.mxu0 %v204
    %228 = vmatprep.subr.bf16.mxu0 0
    %229 = vmatpush1.bf16.msra.mxu0 %v205
    %230 = vmatprep.subr.bf16.mxu0 0
    %231 = vmatpush1.bf16.msra.mxu0 0
    %232 = vmatprep.subr.bf16.mxu0 0
    %233 = vmatpush1.bf16.msra.mxu0 0
    %234 = vmatprep.subr.bf16.mxu0 0
    %235 = vmatpush1.bf16.msra.mxu0 0
    %236 = vmatprep.subr.bf16.mxu0 0
    %237 = vmatpush1.bf16.msra.mxu0 0
    %238 = vmatprep.subr.bf16.mxu0 0
    %239 = vmatpush1.bf16.msra.mxu0 0
    %240 = vmatprep.subr.bf16.mxu0 0
    %241 = vmatpush1.bf16.msra.mxu0 0
    %242 = vmatprep.subr.bf16.mxu0 0
    %243 = vmatpush1.bf16.msra.mxu0 0
    %244 = vmatprep.subr.bf16.mxu0 0
    %245 = vmatpush1.bf16.msra.mxu0 0
    %246 = vmatprep.mubr.bf16.mxu0 0
    %247 = vmatmul.mubr.bf16.gmra.mrb[0].mxu0 %v165
    %v248 = vpop.f32.mrb[0].mxu0
    %v249 = vadd.f32 0.0, %v248
    %v250 = vpop.f32.mrb[0].mxu0
    %v251 = vpop.f32.mrb[0].mxu0
    %v252 = vpop.f32.mrb[0].mxu0
    %253 = vdwg.mxu0
    %v254 = vrot.slane %v249, 4
    %v255 = vadd.f32 %v249, %v254
    %v256 = vrot.slane %v255, 2
    %v257 = vadd.f32 %v255, %v256
    %v258 = vrot.slane %v257, 1
    %v259 = vadd.f32 %v257, %v258
    %v260 = vmul.f32 %v259, %v131
    %v261 = vmul.f32 %v249, %v249
    %v262 = vrot.slane %v261, 4
    %v263 = vadd.f32 %v261, %v262
    %v264 = vrot.slane %v263, 2
    %v265 = vadd.f32 %v263, %v264
    %v266 = vrot.slane %v265, 1
    %v267 = vadd.f32 %v265, %v266
    %v268 = vmul.f32 %v267, %v131
    %v269 = vmul.f32 %v260, %v260
    %v270 = vsub.f32 %v268, %v269
    %v271 = vmax.f32 %v270, 0.0
    %v272 = vsub.f32 %v249, %v260
    %v273 = vadd.f32 %v271, 1e-05
    %v274 = vrsqrt.pop %v273
    %v275 = vmul.f32 %v272, %v274
    %v276 = vmax.f32 %v275, 0.0
    %v277 = vld [vmem:[%s3] sm:$0xf]
    %v278 = vld [vmem:[%s3 + $0x4] sm:$0xf]
    %v279 = vld [vmem:[%s3 + $0x8] sm:$0xf]
    %v280 = vld [vmem:[%s3 + $0xc] sm:$0xf]
    %v281 = vld [vmem:[%s3 + $0x10] sm:$0xf]
    %v282 = vld [vmem:[%s3 + $0x14] sm:$0xf]
    %v283 = vld [vmem:[%s3 + $0x18] sm:$0xf]
    %v284 = vld [vmem:[%s3 + $0x1c] sm:$0xf]
    %v285 = vld [vmem:[%s3 + $0x20] sm:$0xf]
    %v286 = vld [vmem:[%s3 + $0x24] sm:$0xf]
    %v287 = vld [vmem:[%s3 + $0x28] sm:$0xf]
    %v288 = vld [vmem:[%s3 + $0x2c] sm:$0xf]
    %v289 = vld [vmem:[%s3 + $0x30] sm:$0xf]
    %v290 = vld [vmem:[%s3 + $0x34] sm:$0xf]
    %v291 = vld [vmem:[%s3 + $0x38] sm:$0xf]
    %v292 = vld [vmem:[%s3 + $0x3c] sm:$0xf]
    %v293 = vpack.c.bf16 %v276, %v276
    %v310 = vunpack.c.l.b16 %v277
    %v311 = vunpack.c.l.b16 %v278
    %v312 = vunpack.c.l.b16 %v279
    %v313 = vunpack.c.l.b16 %v280
    %v314 = vunpack.c.l.b16 %v281
    %v315 = vunpack.c.l.b16 %v282
    %v316 = vunpack.c.l.b16 %v283
    %v317 = vunpack.c.l.b16 %v284
    %v318 = vunpack.c.l.b16 %v285
    %v319 = vunpack.c.l.b16 %v286
    %v320 = vunpack.c.l.b16 %v287
    %v321 = vunpack.c.l.b16 %v288
    %v322 = vunpack.c.l.b16 %v289
    %v323 = vunpack.c.l.b16 %v290
    %v324 = vunpack.c.l.b16 %v291
    %v325 = vunpack.c.l.b16 %v292
    %v326 = vpack.c.b16 %v311, %v310
    %v327 = vpack.c.b16 %v313, %v312
    %v328 = vpack.c.b16 %v315, %v314
    %v329 = vpack.c.b16 %v317, %v316
    %v330 = vpack.c.b16 %v319, %v318
    %v331 = vpack.c.b16 %v321, %v320
    %v332 = vpack.c.b16 %v323, %v322
    %v333 = vpack.c.b16 %v325, %v324
    %342 = vmatprep.subr.bf16.mxu0 0
    %343 = vmatpush1.bf16.msra.mxu0 %v326
    %344 = vmatprep.subr.bf16.mxu0 0
    %345 = vmatpush1.bf16.msra.mxu0 %v327
    %346 = vmatprep.subr.bf16.mxu0 0
    %347 = vmatpush1.bf16.msra.mxu0 %v328
    %348 = vmatprep.subr.bf16.mxu0 0
    %349 = vmatpush1.bf16.msra.mxu0 %v329
    %350 = vmatprep.subr.bf16.mxu0 0
    %351 = vmatpush1.bf16.msra.mxu0 %v330
    %352 = vmatprep.subr.bf16.mxu0 0
    %353 = vmatpush1.bf16.msra.mxu0 %v331
    %354 = vmatprep.subr.bf16.mxu0 0
    %355 = vmatpush1.bf16.msra.mxu0 %v332
    %356 = vmatprep.subr.bf16.mxu0 0
    %357 = vmatpush1.bf16.msra.mxu0 %v333
    %358 = vmatprep.subr.bf16.mxu0 0
    %359 = vmatpush1.bf16.msra.mxu0 0
    %360 = vmatprep.subr.bf16.mxu0 0
    %361 = vmatpush1.bf16.msra.mxu0 0
    %362 = vmatprep.subr.bf16.mxu0 0
    %363 = vmatpush1.bf16.msra.mxu0 0
    %364 = vmatprep.subr.bf16.mxu0 0
    %365 = vmatpush1.bf16.msra.mxu0 0
    %366 = vmatprep.subr.bf16.mxu0 0
    %367 = vmatpush1.bf16.msra.mxu0 0
    %368 = vmatprep.subr.bf16.mxu0 0
    %369 = vmatpush1.bf16.msra.mxu0 0
    %370 = vmatprep.subr.bf16.mxu0 0
    %371 = vmatpush1.bf16.msra.mxu0 0
    %372 = vmatprep.subr.bf16.mxu0 0
    %373 = vmatpush1.bf16.msra.mxu0 0
    %374 = vmatprep.mubr.bf16.mxu0 0
    %375 = vmatmul.mubr.bf16.gmra.mrb[0].mxu0 %v293
    %v376 = vpop.f32.mrb[0].mxu0
    %v377 = vadd.f32 0.0, %v376
    %v378 = vpop.f32.mrb[0].mxu0
    %v379 = vpop.f32.mrb[0].mxu0
    %v380 = vpop.f32.mrb[0].mxu0
    %381 = vdwg.mxu0
    %v382 = vrot.slane %v377, 4
    %v383 = vadd.f32 %v377, %v382
    %v384 = vrot.slane %v383, 2
    %v385 = vadd.f32 %v383, %v384
    %v386 = vrot.slane %v385, 1
    %v387 = vadd.f32 %v385, %v386
    %v388 = vmul.f32 %v387, %v131
    %v389 = vmul.f32 %v377, %v377
    %v390 = vrot.slane %v389, 4
    %v391 = vadd.f32 %v389, %v390
    %v392 = vrot.slane %v391, 2
    %v393 = vadd.f32 %v391, %v392
    %v394 = vrot.slane %v393, 1
    %v395 = vadd.f32 %v393, %v394
    %v396 = vmul.f32 %v395, %v131
    %v397 = vmul.f32 %v388, %v388
    %v398 = vsub.f32 %v396, %v397
    %v399 = vmax.f32 %v398, 0.0
    %v400 = vsub.f32 %v377, %v388
    %v401 = vadd.f32 %v399, 1e-05
    %v402 = vrsqrt.pop %v401
    %v403 = vmul.f32 %v400, %v402
    %404 = vst [vmem:[#allocation2] sm:$0xff] %v403
    // Predicated region
    $region18: #{mlp_forward.1} parent=1 // pred_check
      _
    $region19: #{mlp_forward.1} parent=1 // pred_check_branch
      %406 = sbr.rel (0) target = $region21
    $region20: #{mlp_forward.1} parent=1 // pred_region
      %s408 = ssub.s32 128, 128
      %409 = vsyncadd [#allocation3], %s408
      %s411 = sshll.u32 [#allocation2], 4
      %s412 = int_to_ptr.vmem [resolvable:$true] %s411
      %414 = dma.vmem_to_hbm [thread:$0]  %s412, 128, %s4, [#allocation3]
    $region21: #{mlp_forward.1} parent=1 // pred_fallthru
      _
    // Predicated region
    $region22: #{mlp_forward.1} parent=1 // pred_check
      _
    $region23: #{mlp_forward.1} parent=1 // pred_check_branch
      %416 = sbr.rel (0) target = $region25
    $region24: #{mlp_forward.1} parent=1 // pred_region
      %417 = dma.done [#allocation3], 128
    $region25: #{mlp_forward.1} parent=1 // pred_fallthru
      _
    %418 = vsyncpa [#allocation3], 1

</llo_original>
